<compile_context>
chip_gen: v7x
topology: tpu7x:2x2x1
jax: 0.10.0
libtpu: 0.0.40
codegen_flags: <defaults>
</compile_context>

<pallas_src>
import jax
import jax.numpy as jnp
from jax.experimental import pallas as pl
from jax.experimental.pallas import tpu as pltpu

Z_DIM = 100
HIDDEN = 128
IMG_DIM = 28 * 28  # 784


def _round_up(n, m):
    return (n + m - 1) // m * m


def generator_kernel(x_ref, w1_ref, b1_ref, w2_ref, b2_ref, o_ref):
    # Linear 1: bf16 x bf16 MXU matmul with f32 accumulate, bias + ReLU on VPU.
    x = x_ref[...].astype(jnp.bfloat16)
    h = jnp.dot(x, w1_ref[...], preferred_element_type=jnp.float32)
    h = jnp.maximum(h + b1_ref[...], 0.0)
    # Linear 2: bf16 operands, f32 MXU accumulate, f32 bias + tanh (EUP).
    y = jnp.dot(h.astype(jnp.bfloat16), w2_ref[...],
                preferred_element_type=jnp.float32)
    y = y + b2_ref[...]
    o_ref[...] = jnp.tanh(y).astype(o_ref.dtype)


def prepare_params(w1, b1, w2, b2):
    """One-time parameter prep (hoisted out of the per-call path):
    weights stored (in, out) in bf16, biases as (1, out) f32."""
    w1p = jnp.asarray(w1).astype(jnp.bfloat16)
    w2p = jnp.asarray(w2).astype(jnp.bfloat16)
    b1p = jnp.asarray(b1, jnp.float32).reshape(1, -1)
    b2p = jnp.asarray(b2, jnp.float32).reshape(1, -1)
    return w1p, b1p, w2p, b2p


def generator_forward(x, w1, b1, w2, b2, *, tb=1024):
    """x: (B, Z_DIM); params from prepare_params. Returns (B, IMG_DIM) bf16."""
    B, z = x.shape
    hidden = w1.shape[1]
    img_dim = w2.shape[1]
    assert b1.shape == (1, hidden), b1.shape
    assert b2.shape == (1, img_dim), b2.shape

    # Batch tile: single full tile for small B (block dim == full array dim is
    # always legal), otherwise an adaptive multiple of 8 so the partial last
    # block (masked by Pallas) wastes at most 7 rows per grid.
    if B <= tb:
        TB = B
    else:
        n_tiles = pl.cdiv(B, tb)
        TB = _round_up(pl.cdiv(B, n_tiles), 8)
    grid = (pl.cdiv(B, TB),)

    return pl.pallas_call(
        generator_kernel,
        out_shape=jax.ShapeDtypeStruct((B, img_dim), jnp.bfloat16),
        grid_spec=pltpu.PrefetchScalarGridSpec(
            num_scalar_prefetch=0,
            grid=grid,
            in_specs=[
                pl.BlockSpec((TB, z), lambda i: (i, 0)),            # x: per-tile stream
                pl.BlockSpec((z, hidden), lambda i: (0, 0)),        # w1: VMEM-resident
                pl.BlockSpec((1, hidden), lambda i: (0, 0)),        # b1: resident
                pl.BlockSpec((hidden, img_dim), lambda i: (0, 0)),  # w2: resident
                pl.BlockSpec((1, img_dim), lambda i: (0, 0)),       # b2: resident
            ],
            out_specs=pl.BlockSpec((TB, img_dim), lambda i: (i, 0)),
        ),
        compiler_params=pltpu.CompilerParams(
            dimension_semantics=("parallel",),  # megacore / v7x 2-TC sharding
        ),
    )(x, w1, b1, w2, b2)


generator_forward_jit = jax.jit(generator_forward, static_argnames=("tb",))


def init_params(key):
    """PyTorch-style nn.Linear init; weights stored transposed (in, out)."""
    k1, k2, k3, k4 = jax.random.split(key, 4)
    lim1 = 1.0 / (Z_DIM ** 0.5)
    lim2 = 1.0 / (HIDDEN ** 0.5)
    w1 = jax.random.uniform(k1, (Z_DIM, HIDDEN), jnp.float32, -lim1, lim1)
    b1 = jax.random.uniform(k2, (1, HIDDEN), jnp.float32, -lim1, lim1)
    w2 = jax.random.uniform(k3, (HIDDEN, IMG_DIM), jnp.float32, -lim2, lim2)
    b2 = jax.random.uniform(k4, (1, IMG_DIM), jnp.float32, -lim2, lim2)
    return w1, b1, w2, b2


def generator_ref_f32(x, w1, b1, w2, b2):
    h = jnp.maximum(x @ w1 + b1, 0.0)
    return jnp.tanh(h @ w2 + b2)


def generator_ref_matched(x, w1, b1, w2, b2):
    """Reference with the same bf16 casts as the kernel."""
    h = jnp.dot(x.astype(jnp.bfloat16), w1.astype(jnp.bfloat16),
                preferred_element_type=jnp.float32) + b1
    h = jnp.maximum(h, 0.0)
    y = jnp.dot(h.astype(jnp.bfloat16), w2.astype(jnp.bfloat16),
                preferred_element_type=jnp.float32) + b2
    return jnp.tanh(y).astype(jnp.bfloat16)


def _check(x, raw_params, prepped, **kw):
    out = jax.block_until_ready(generator_forward_jit(x, *prepped, **kw))
    assert out.shape == (x.shape[0], IMG_DIM), out.shape
    out_f32 = out.astype(jnp.float32)
    ref_m = generator_ref_matched(x, *raw_params).astype(jnp.float32)
    ref_f = generator_ref_f32(x, *raw_params)
    assert jnp.allclose(out_f32, ref_m, atol=1e-2), "mismatch vs matched bf16 reference"
    assert jnp.allclose(out_f32, ref_f, atol=3e-2), "mismatch vs f32 reference"


if __name__ == "__main__":
    key = jax.random.PRNGKey(0)
    kx1, kx2, kp = jax.random.split(key, 3)
    raw_params = init_params(kp)
    prepped = prepare_params(*raw_params)

    # Small single-tile case (B=8 -> one grid step).
    x_small = jax.random.normal(kx1, (8, Z_DIM), jnp.float32)
    _check(x_small, raw_params, prepped)

    # Ragged multi-tile case (B=40, TB=16 -> grid=3, last block partial/masked).
    x_multi = jax.random.normal(kx2, (40, Z_DIM), jnp.float32)
    _check(x_multi, raw_params, prepped, tb=16)

    print("KERNEL_OK")
</pallas_src>

<mosaic_0001>
module attributes {stable_mosaic.version = 11 : i64} {
  func.func @generator_kernel(%arg0: i32, %arg1: memref<8x100xf32, #tpu.memory_space<vmem>>, %arg2: memref<100x128xbf16, #tpu.memory_space<vmem>>, %arg3: memref<1x128xf32, #tpu.memory_space<vmem>>, %arg4: memref<128x784xbf16, #tpu.memory_space<vmem>>, %arg5: memref<1x784xf32, #tpu.memory_space<vmem>>, %arg6: memref<8x784xbf16, #tpu.memory_space<vmem>>) attributes {dimension_semantics = [#tpu.dimension_semantics<parallel>], iteration_bounds = array<i64: 1>, scalar_prefetch = 0 : i64, scratch_operands = 0 : i64, tpu.core_type = #tpu.core_type<tc>, window_params = [{transform_indices = @transform_0, window_bounds = array<i64: 8, 100>}, {pipeline_mode = #tpu.pipeline_mode<synchronous>, transform_indices = @transform_1, window_bounds = array<i64: 100, 128>}, {pipeline_mode = #tpu.pipeline_mode<synchronous>, transform_indices = @transform_2, window_bounds = array<i64: 1, 128>}, {pipeline_mode = #tpu.pipeline_mode<synchronous>, transform_indices = @transform_3, window_bounds = array<i64: 128, 784>}, {pipeline_mode = #tpu.pipeline_mode<synchronous>, transform_indices = @transform_4, window_bounds = array<i64: 1, 784>}, {transform_indices = @transform_5, window_bounds = array<i64: 8, 784>}]} {
    %c0 = arith.constant 0 : index
    %c0_0 = arith.constant 0 : index
    %0 = vector.load %arg1[%c0, %c0_0] : memref<8x100xf32, #tpu.memory_space<vmem>>, vector<8x100xf32>
    %1 = arith.truncf %0 : vector<8x100xf32> to vector<8x100xbf16>
    %c0_1 = arith.constant 0 : index
    %c0_2 = arith.constant 0 : index
    %2 = vector.load %arg2[%c0_1, %c0_2] : memref<100x128xbf16, #tpu.memory_space<vmem>>, vector<100x128xbf16>
    %cst = arith.constant dense<0.000000e+00> : vector<8x128xf32>
    %3 = tpu.matmul %1, %2, %cst {dimension_numbers = #tpu.dot_dimension_numbers<[1], [0], [0], [1], [0, 0, 1, 1], [], []>} : vector<8x100xbf16>, vector<100x128xbf16>, vector<8x128xf32> -> vector<8x128xf32>
    %c0_3 = arith.constant 0 : index
    %c0_4 = arith.constant 0 : index
    %4 = vector.load %arg3[%c0_3, %c0_4] : memref<1x128xf32, #tpu.memory_space<vmem>>, vector<1x128xf32>
    %5 = vector.broadcast %4 : vector<1x128xf32> to vector<8x128xf32>
    %6 = arith.addf %3, %5 : vector<8x128xf32>
    %cst_5 = arith.constant 0.000000e+00 : f32
    %7 = vector.broadcast %cst_5 : f32 to vector<8x128xf32>
    %8 = arith.maximumf %6, %7 : vector<8x128xf32>
    %9 = arith.truncf %8 : vector<8x128xf32> to vector<8x128xbf16>
    %c0_6 = arith.constant 0 : index
    %c0_7 = arith.constant 0 : index
    %10 = vector.load %arg4[%c0_6, %c0_7] : memref<128x784xbf16, #tpu.memory_space<vmem>>, vector<128x784xbf16>
    %cst_8 = arith.constant dense<0.000000e+00> : vector<8x784xf32>
    %11 = tpu.matmul %9, %10, %cst_8 {dimension_numbers = #tpu.dot_dimension_numbers<[1], [0], [0], [1], [0, 0, 1, 1], [], []>} : vector<8x128xbf16>, vector<128x784xbf16>, vector<8x784xf32> -> vector<8x784xf32>
    %c0_9 = arith.constant 0 : index
    %c0_10 = arith.constant 0 : index
    %12 = vector.load %arg5[%c0_9, %c0_10] : memref<1x784xf32, #tpu.memory_space<vmem>>, vector<1x784xf32>
    %13 = vector.broadcast %12 : vector<1x784xf32> to vector<8x784xf32>
    %14 = arith.addf %11, %13 : vector<8x784xf32>
    %15 = math.tanh %14 : vector<8x784xf32>
    %16 = arith.truncf %15 : vector<8x784xf32> to vector<8x784xbf16>
    %c0_11 = arith.constant 0 : index
    %c0_12 = arith.constant 0 : index
    %17 = vector.load %arg6[%c0_11, %c0_12] : memref<8x784xbf16, #tpu.memory_space<vmem>>, vector<8x784xbf16>
    tpu.vector_store %arg6[%c0_11, %c0_12], %16 {strides = array<i32>} : memref<8x784xbf16, #tpu.memory_space<vmem>>, vector<8x784xbf16>,
    return
  }
  func.func @transform_0(%arg0: i32) -> (i32, i32) {
    %c0_i32 = arith.constant 0 : i32
    %c0_i32_0 = arith.constant 0 : i32
    return %arg0, %c0_i32 : i32, i32
  }
  func.func @transform_1(%arg0: i32) -> (i32, i32) {
    %c0_i32 = arith.constant 0 : i32
    %c0_i32_0 = arith.constant 0 : i32
    %c0_i32_1 = arith.constant 0 : i32
    return %c0_i32, %c0_i32_0 : i32, i32
  }
  func.func @transform_2(%arg0: i32) -> (i32, i32) {
    %c0_i32 = arith.constant 0 : i32
    %c0_i32_0 = arith.constant 0 : i32
    %c0_i32_1 = arith.constant 0 : i32
    return %c0_i32, %c0_i32_0 : i32, i32
  }
  func.func @transform_3(%arg0: i32) -> (i32, i32) {
    %c0_i32 = arith.constant 0 : i32
    %c0_i32_0 = arith.constant 0 : i32
    %c0_i32_1 = arith.constant 0 : i32
    return %c0_i32, %c0_i32_0 : i32, i32
  }
  func.func @transform_4(%arg0: i32) -> (i32, i32) {
    %c0_i32 = arith.constant 0 : i32
    %c0_i32_0 = arith.constant 0 : i32
    %c0_i32_1 = arith.constant 0 : i32
    return %c0_i32, %c0_i32_0 : i32, i32
  }
  func.func @transform_5(%arg0: i32) -> (i32, i32) {
    %c0_i32 = arith.constant 0 : i32
    %c0_i32_0 = arith.constant 0 : i32
    return %arg0, %c0_i32 : i32, i32
  }
}

</mosaic_0001>

<llo_original>
// kernel: generator_forward.1
$region0: #{generator_forward.1}
  #allocation0 [shape = 'u32[]', space=smem, size = 0x4, offset = 0x4, fixed_abs, tag = 'smem constant byte address 0x4 - core index']
  #allocation1 [shape = 'u32[144,128]{1,0:T(1,128)}', space=vmem, size = 0x12000, scoped, tag = 'internal scratch']
  %s0 = inlined_call_operand.vmem [shape: f32[8,100], index: 0, kind: input, shape index: {}]
  %s1 = inlined_call_operand.vmem [shape: bf16[100,128], index: 1, kind: input, shape index: {}]
  %s2 = inlined_call_operand.vmem [shape: f32[1,128], index: 2, kind: input, shape index: {}]
  %s3 = inlined_call_operand.vmem [shape: bf16[128,784], index: 3, kind: input, shape index: {}]
  %s4 = inlined_call_operand.vmem [shape: f32[1,784], index: 4, kind: input, shape index: {}]
  %s5 = inlined_call_operand.hbm [shape: bf16[8,784], index: 5, kind: output, shape index: {}]
  %s6 = sld [smem:[#allocation0]]
  $region30: #{generator_forward.1} parent=0
    _
  %s8 = ssub.s32 1, %s6
  %s9 = scalar_select 0, %s8, %s6
  $region1: #{generator_forward.1} parent=0
    #allocation2 [shape = 'u8[14336]{0}', space=vmem, size = 0x3800, scoped, tag = 'output window, operand 0, single buffered']
    #allocation3 [shape = 's32[1]{0}', space=sflag, size = 0x4, scoped, tag = 'scoped memory for generator_forward.1']
    %10 = vsyncpa [#allocation3], 0
    // Predicated region
    $region2: #{generator_forward.1} parent=1 // pred_check
      _
    $region3: #{generator_forward.1} parent=1 // pred_check_branch
      %12 = sbr.rel (0) target = $region5
    $region4: #{generator_forward.1} parent=1 // pred_region
      _
    $region5: #{generator_forward.1} parent=1 // pred_fallthru
      _
    // Predicated region
    $region6: #{generator_forward.1} parent=1 // pred_check
      _
    $region7: #{generator_forward.1} parent=1 // pred_check_branch
      %14 = sbr.rel (0) target = $region9
    $region8: #{generator_forward.1} parent=1 // pred_region
      _
    $region9: #{generator_forward.1} parent=1 // pred_fallthru
      _
    // Predicated region
    $region10: #{generator_forward.1} parent=1 // pred_check
      _
    $region11: #{generator_forward.1} parent=1 // pred_check_branch
      %16 = sbr.rel (0) target = $region13
    $region12: #{generator_forward.1} parent=1 // pred_region
      _
    $region13: #{generator_forward.1} parent=1 // pred_fallthru
      _
    // Predicated region
    $region14: #{generator_forward.1} parent=1 // pred_check
      _
    $region15: #{generator_forward.1} parent=1 // pred_check_branch
      %18 = sbr.rel (0) target = $region17
    $region16: #{generator_forward.1} parent=1 // pred_region
      _
    $region17: #{generator_forward.1} parent=1 // pred_fallthru
      _
    // Predicated region
    $region18: #{generator_forward.1} parent=1 // pred_check
      _
    $region19: #{generator_forward.1} parent=1 // pred_check_branch
      %20 = sbr.rel (0) target = $region21
    $region20: #{generator_forward.1} parent=1 // pred_region
      _
    $region21: #{generator_forward.1} parent=1 // pred_fallthru
      _
    %v22 = vld [vmem:[%s0] sm:$0xff]
    %v23 = vpack.c.bf16 %v22, %v22
    %v24 = vld [vmem:[%s1] sm:$0xf]
    %v25 = vld [vmem:[%s1 + $0x4] sm:$0xf]
    %v26 = vld [vmem:[%s1 + $0x8] sm:$0xf]
    %v27 = vld [vmem:[%s1 + $0xc] sm:$0xf]
    %v28 = vld [vmem:[%s1 + $0x10] sm:$0xf]
    %v29 = vld [vmem:[%s1 + $0x14] sm:$0xf]
    %v30 = vld [vmem:[%s1 + $0x18] sm:$0xf]
    %v31 = vld [vmem:[%s1 + $0x1c] sm:$0xf]
    %v32 = vld [vmem:[%s1 + $0x20] sm:$0xf]
    %v33 = vld [vmem:[%s1 + $0x24] sm:$0xf]
    %v34 = vld [vmem:[%s1 + $0x28] sm:$0xf]
    %v35 = vld [vmem:[%s1 + $0x2c] sm:$0xf]
    %v36 = vld [vmem:[%s1 + $0x30] sm:$0x3]
    %v37 = vld [vmem:[%s2] sm:$0x1]
    %v39 = vlaneseq
    %v40 = vshrl.u32 %v39, 7
    %v41 = vsub.s32 0, %v40
    %v42 = vrot.slane %v37, %v41
    %v57 = vunpack.c.l.b16 %v24
    %v58 = vunpack.c.l.b16 %v25
    %v59 = vunpack.c.l.b16 %v26
    %v60 = vunpack.c.l.b16 %v27
    %v61 = vunpack.c.l.b16 %v28
    %v62 = vunpack.c.l.b16 %v29
    %v63 = vunpack.c.l.b16 %v30
    %v64 = vunpack.c.l.b16 %v31
    %v65 = vunpack.c.l.b16 %v32
    %v66 = vunpack.c.l.b16 %v33
    %v67 = vunpack.c.l.b16 %v34
    %v68 = vunpack.c.l.b16 %v35
    %v69 = vunpack.c.l.b16 %v36
    %v70 = vpack.c.b16 %v58, %v57
    %v71 = vpack.c.b16 %v60, %v59
    %v72 = vpack.c.b16 %v62, %v61
    %v73 = vpack.c.b16 %v64, %v63
    %v74 = vpack.c.b16 %v66, %v65
    %v75 = vpack.c.b16 %v68, %v67
    %v76 = vpack.c.b16 %v69, %v69
    %vm83 = vcmask 818176
    %v85 = vsel %vm83, %v23, 0
    %vm87 = vcmask 1041408
    %v89 = vsel %vm87, %v76, 0
    %91 = vmatprep.subr.bf16.mxu0 0
    %92 = vmatpush1.bf16.msra.mxu0 %v70
    %93 = vmatprep.subr.bf16.mxu0 0
    %94 = vmatpush1.bf16.msra.mxu0 %v71
    %95 = vmatprep.subr.bf16.mxu0 0
    %96 = vmatpush1.bf16.msra.mxu0 %v72
    %97 = vmatprep.subr.bf16.mxu0 0
    %98 = vmatpush1.bf16.msra.mxu0 %v73
    %99 = vmatprep.subr.bf16.mxu0 0
    %100 = vmatpush1.bf16.msra.mxu0 %v74
    %101 = vmatprep.subr.bf16.mxu0 0
    %102 = vmatpush1.bf16.msra.mxu0 %v75
    %103 = vmatprep.subr.bf16.mxu0 0
    %104 = vmatpush1.bf16.msra.mxu0 %v89
    %105 = vmatprep.subr.bf16.mxu0 0
    %106 = vmatpush1.bf16.msra.mxu0 0
    %107 = vmatprep.subr.bf16.mxu0 0
    %108 = vmatpush1.bf16.msra.mxu0 0
    %109 = vmatprep.subr.bf16.mxu0 0
    %110 = vmatpush1.bf16.msra.mxu0 0
    %111 = vmatprep.subr.bf16.mxu0 0
    %112 = vmatpush1.bf16.msra.mxu0 0
    %113 = vmatprep.subr.bf16.mxu0 0
    %114 = vmatpush1.bf16.msra.mxu0 0
    %115 = vmatprep.subr.bf16.mxu0 0
    %116 = vmatpush1.bf16.msra.mxu0 0
    %117 = vmatprep.subr.bf16.mxu0 0
    %118 = vmatpush1.bf16.msra.mxu0 0
    %119 = vmatprep.subr.bf16.mxu0 0
    %120 = vmatpush1.bf16.msra.mxu0 0
    %121 = vmatprep.subr.bf16.mxu0 0
    %122 = vmatpush1.bf16.msra.mxu0 0
    %123 = vmatprep.mubr.bf16.mxu0 0
    %124 = vmatmul.mubr.bf16.gmra.mrb[0].mxu0 %v85
    %v125 = vpop.f32.mrb[0].mxu0
    %v126 = vadd.f32 %v42, %v125
    %v127 = vpop.f32.mrb[0].mxu0
    %v128 = vpop.f32.mrb[0].mxu0
    %v129 = vpop.f32.mrb[0].mxu0
    %130 = vdwg.mxu0
    %v131 = vmax.f32 %v126, 0.0
    %v132 = vpack.c.bf16 %v131, %v131
    %v133 = vld [vmem:[%s3] sm:$0xff]
    %v134 = vld [vmem:[%s3 + $0x8] sm:$0xff]
    %v135 = vld [vmem:[%s3 + $0x10] sm:$0xff]
    %v136 = vld [vmem:[%s3 + $0x18] sm:$0xf]
    %v137 = vld [vmem:[%s3 + $0x1c] sm:$0xff]
    %v138 = vld [vmem:[%s3 + $0x24] sm:$0xff]
    %v139 = vld [vmem:[%s3 + $0x2c] sm:$0xff]
    %v140 = vld [vmem:[%s3 + $0x34] sm:$0xf]
    %v141 = vld [vmem:[%s3 + $0x38] sm:$0xff]
    %v142 = vld [vmem:[%s3 + $0x40] sm:$0xff]
    %v143 = vld [vmem:[%s3 + $0x48] sm:$0xff]
    %v144 = vld [vmem:[%s3 + $0x50] sm:$0xf]
    %v145 = vld [vmem:[%s3 + $0x54] sm:$0xff]
    %v146 = vld [vmem:[%s3 + $0x5c] sm:$0xff]
    %v147 = vld [vmem:[%s3 + $0x64] sm:$0xff]
    %v148 = vld [vmem:[%s3 + $0x6c] sm:$0xf]
    %v149 = vld [vmem:[%s3 + $0x70] sm:$0xff]
    %v150 = vld [vmem:[%s3 + $0x78] sm:$0xff]
    %v151 = vld [vmem:[%s3 + $0x80] sm:$0xff]
    %v152 = vld [vmem:[%s3 + $0x88] sm:$0xf]
    %v153 = vld [vmem:[%s3 + $0x8c] sm:$0xff]
    %v154 = vld [vmem:[%s3 + $0x94] sm:$0xff]
    %v155 = vld [vmem:[%s3 + $0x9c] sm:$0xff]
    %v156 = vld [vmem:[%s3 + $0xa4] sm:$0xf]
    %v157 = vld [vmem:[%s3 + $0xa8] sm:$0xff]
    %v158 = vld [vmem:[%s3 + $0xb0] sm:$0xff]
    %v159 = vld [vmem:[%s3 + $0xb8] sm:$0xff]
    %v160 = vld [vmem:[%s3 + $0xc0] sm:$0xf]
    %v161 = vld [vmem:[%s3 + $0xc4] sm:$0xff]
    %v162 = vld [vmem:[%s3 + $0xcc] sm:$0xff]
    %v163 = vld [vmem:[%s3 + $0xd4] sm:$0xff]
    %v164 = vld [vmem:[%s3 + $0xdc] sm:$0xf]
    %v165 = vld [vmem:[%s3 + $0xe0] sm:$0xff]
    %v166 = vld [vmem:[%s3 + $0xe8] sm:$0xff]
    %v167 = vld [vmem:[%s3 + $0xf0] sm:$0xff]
    %v168 = vld [vmem:[%s3 + $0xf8] sm:$0xf]
    %v169 = vld [vmem:[%s3 + $0xfc] sm:$0xff]
    %v170 = vld [vmem:[%s3 + $0x104] sm:$0xff]
    %v171 = vld [vmem:[%s3 + $0x10c] sm:$0xff]
    %v172 = vld [vmem:[%s3 + $0x114] sm:$0xf]
    %v173 = vld [vmem:[%s3 + $0x118] sm:$0xff]
    %v174 = vld [vmem:[%s3 + $0x120] sm:$0xff]
    %v175 = vld [vmem:[%s3 + $0x128] sm:$0xff]
    %v176 = vld [vmem:[%s3 + $0x130] sm:$0xf]
    %v177 = vld [vmem:[%s3 + $0x134] sm:$0xff]
    %v178 = vld [vmem:[%s3 + $0x13c] sm:$0xff]
    %v179 = vld [vmem:[%s3 + $0x144] sm:$0xff]
    %v180 = vld [vmem:[%s3 + $0x14c] sm:$0xf]
    %v181 = vld [vmem:[%s3 + $0x150] sm:$0xff]
    %v182 = vld [vmem:[%s3 + $0x158] sm:$0xff]
    %v183 = vld [vmem:[%s3 + $0x160] sm:$0xff]
    %v184 = vld [vmem:[%s3 + $0x168] sm:$0xf]
    %v185 = vld [vmem:[%s3 + $0x16c] sm:$0xff]
    %v186 = vld [vmem:[%s3 + $0x174] sm:$0xff]
    %v187 = vld [vmem:[%s3 + $0x17c] sm:$0xff]
    %v188 = vld [vmem:[%s3 + $0x184] sm:$0xf]
    %v189 = vld [vmem:[%s3 + $0x188] sm:$0xff]
    %v190 = vld [vmem:[%s3 + $0x190] sm:$0xff]
    %v191 = vld [vmem:[%s3 + $0x198] sm:$0xff]
    %v192 = vld [vmem:[%s3 + $0x1a0] sm:$0xf]
    %v193 = vld [vmem:[%s3 + $0x1a4] sm:$0xff]
    %v194 = vld [vmem:[%s3 + $0x1ac] sm:$0xff]
    %v195 = vld [vmem:[%s3 + $0x1b4] sm:$0xff]
    %v196 = vld [vmem:[%s3 + $0x1bc] sm:$0xf]
    %v197 = vld [vmem:[%s4] sm:$0x7f]
    %v199 = vlaneseq
    %v200 = vshrl.u32 %v199, 7
    %v201 = vsub.s32 0, %v200
    %v202 = vrot.slane %v197, %v201
    %v203 = vlaneseq
    %v204 = vshrl.u32 %v203, 7
    %v205 = vsub.s32 1, %v204
    %v206 = vrot.slane %v197, %v205
    %v207 = vlaneseq
    %v208 = vshrl.u32 %v207, 7
    %v209 = vsub.s32 2, %v208
    %v210 = vrot.slane %v197, %v209
    %v211 = vlaneseq
    %v212 = vshrl.u32 %v211, 7
    %v213 = vsub.s32 3, %v212
    %v214 = vrot.slane %v197, %v213
    %v215 = vlaneseq
    %v216 = vshrl.u32 %v215, 7
    %v217 = vsub.s32 4, %v216
    %v218 = vrot.slane %v197, %v217
    %v219 = vlaneseq
    %v220 = vshrl.u32 %v219, 7
    %v221 = vsub.s32 5, %v220
    %v222 = vrot.slane %v197, %v221
    %v223 = vlaneseq
    %v224 = vshrl.u32 %v223, 7
    %v225 = vsub.s32 6, %v224
    %v226 = vrot.slane %v197, %v225
    %v298 = vunpack.c.l.b16 %v133
    %v299 = vunpack.c.h.b16 %v133
    %v300 = vunpack.c.l.b16 %v134
    %v301 = vunpack.c.h.b16 %v134
    %v302 = vunpack.c.l.b16 %v135
    %v303 = vunpack.c.h.b16 %v135
    %v304 = vunpack.c.l.b16 %v136
    %v305 = vunpack.c.l.b16 %v137
    %v306 = vunpack.c.h.b16 %v137
    %v307 = vunpack.c.l.b16 %v138
    %v308 = vunpack.c.h.b16 %v138
    %v309 = vunpack.c.l.b16 %v139
    %v310 = vunpack.c.h.b16 %v139
    %v311 = vunpack.c.l.b16 %v140
    %v312 = vunpack.c.l.b16 %v141
    %v313 = vunpack.c.h.b16 %v141
    %v314 = vunpack.c.l.b16 %v142
    %v315 = vunpack.c.h.b16 %v142
    %v316 = vunpack.c.l.b16 %v143
    %v317 = vunpack.c.h.b16 %v143
    %v318 = vunpack.c.l.b16 %v144
    %v319 = vunpack.c.l.b16 %v145
    %v320 = vunpack.c.h.b16 %v145
    %v321 = vunpack.c.l.b16 %v146
    %v322 = vunpack.c.h.b16 %v146
    %v323 = vunpack.c.l.b16 %v147
    %v324 = vunpack.c.h.b16 %v147
    %v325 = vunpack.c.l.b16 %v148
    %v326 = vunpack.c.l.b16 %v149
    %v327 = vunpack.c.h.b16 %v149
    %v328 = vunpack.c.l.b16 %v150
    %v329 = vunpack.c.h.b16 %v150
    %v330 = vunpack.c.l.b16 %v151
    %v331 = vunpack.c.h.b16 %v151
    %v332 = vunpack.c.l.b16 %v152
    %v333 = vunpack.c.l.b16 %v153
    %v334 = vunpack.c.h.b16 %v153
    %v335 = vunpack.c.l.b16 %v154
    %v336 = vunpack.c.h.b16 %v154
    %v337 = vunpack.c.l.b16 %v155
    %v338 = vunpack.c.h.b16 %v155
    %v339 = vunpack.c.l.b16 %v156
    %v340 = vunpack.c.l.b16 %v157
    %v341 = vunpack.c.h.b16 %v157
    %v342 = vunpack.c.l.b16 %v158
    %v343 = vunpack.c.h.b16 %v158
    %v344 = vunpack.c.l.b16 %v159
    %v345 = vunpack.c.h.b16 %v159
    %v346 = vunpack.c.l.b16 %v160
    %v347 = vunpack.c.l.b16 %v161
    %v348 = vunpack.c.h.b16 %v161
    %v349 = vunpack.c.l.b16 %v162
    %v350 = vunpack.c.h.b16 %v162
    %v351 = vunpack.c.l.b16 %v163
    %v352 = vunpack.c.h.b16 %v163
    %v353 = vunpack.c.l.b16 %v164
    %v354 = vunpack.c.l.b16 %v165
    %v355 = vunpack.c.h.b16 %v165
    %v356 = vunpack.c.l.b16 %v166
    %v357 = vunpack.c.h.b16 %v166
    %v358 = vunpack.c.l.b16 %v167
    %v359 = vunpack.c.h.b16 %v167
    %v360 = vunpack.c.l.b16 %v168
    %v361 = vunpack.c.l.b16 %v169
    %v362 = vunpack.c.h.b16 %v169
    %v363 = vunpack.c.l.b16 %v170
    %v364 = vunpack.c.h.b16 %v170
    %v365 = vunpack.c.l.b16 %v171
    %v366 = vunpack.c.h.b16 %v171
    %v367 = vunpack.c.l.b16 %v172
    %v368 = vunpack.c.l.b16 %v173
    %v369 = vunpack.c.h.b16 %v173
    %v370 = vunpack.c.l.b16 %v174
    %v371 = vunpack.c.h.b16 %v174
    %v372 = vunpack.c.l.b16 %v175
    %v373 = vunpack.c.h.b16 %v175
    %v374 = vunpack.c.l.b16 %v176
    %v375 = vunpack.c.l.b16 %v177
    %v376 = vunpack.c.h.b16 %v177
    %v377 = vunpack.c.l.b16 %v178
    %v378 = vunpack.c.h.b16 %v178
    %v379 = vunpack.c.l.b16 %v179
    %v380 = vunpack.c.h.b16 %v179
    %v381 = vunpack.c.l.b16 %v180
    %v382 = vunpack.c.l.b16 %v181
    %v383 = vunpack.c.h.b16 %v181
    %v384 = vunpack.c.l.b16 %v182
    %v385 = vunpack.c.h.b16 %v182
    %v386 = vunpack.c.l.b16 %v183
    %v387 = vunpack.c.h.b16 %v183
    %v388 = vunpack.c.l.b16 %v184
    %v389 = vunpack.c.l.b16 %v185
    %v390 = vunpack.c.h.b16 %v185
    %v391 = vunpack.c.l.b16 %v186
    %v392 = vunpack.c.h.b16 %v186
    %v393 = vunpack.c.l.b16 %v187
    %v394 = vunpack.c.h.b16 %v187
    %v395 = vunpack.c.l.b16 %v188
    %v396 = vunpack.c.l.b16 %v189
    %v397 = vunpack.c.h.b16 %v189
    %v398 = vunpack.c.l.b16 %v190
    %v399 = vunpack.c.h.b16 %v190
    %v400 = vunpack.c.l.b16 %v191
    %v401 = vunpack.c.h.b16 %v191
    %v402 = vunpack.c.l.b16 %v192
    %v403 = vunpack.c.l.b16 %v193
    %v404 = vunpack.c.h.b16 %v193
    %v405 = vunpack.c.l.b16 %v194
    %v406 = vunpack.c.h.b16 %v194
    %v407 = vunpack.c.l.b16 %v195
    %v408 = vunpack.c.h.b16 %v195
    %v409 = vunpack.c.l.b16 %v196
    %v410 = vpack.c.b16 %v305, %v298
    %v411 = vpack.c.b16 %v306, %v299
    %v412 = vpack.c.b16 %v307, %v300
    %v413 = vpack.c.b16 %v308, %v301
    %v414 = vpack.c.b16 %v309, %v302
    %v415 = vpack.c.b16 %v310, %v303
    %v416 = vpack.c.b16 %v311, %v304
    %v417 = vpack.c.b16 %v319, %v312
    %v418 = vpack.c.b16 %v320, %v313
    %v419 = vpack.c.b16 %v321, %v314
    %v420 = vpack.c.b16 %v322, %v315
    %v421 = vpack.c.b16 %v323, %v316
    %v422 = vpack.c.b16 %v324, %v317
    %v423 = vpack.c.b16 %v325, %v318
    %v424 = vpack.c.b16 %v333, %v326
    %v425 = vpack.c.b16 %v334, %v327
    %v426 = vpack.c.b16 %v335, %v328
    %v427 = vpack.c.b16 %v336, %v329
    %v428 = vpack.c.b16 %v337, %v330
    %v429 = vpack.c.b16 %v338, %v331
    %v430 = vpack.c.b16 %v339, %v332
    %v431 = vpack.c.b16 %v347, %v340
    %v432 = vpack.c.b16 %v348, %v341
    %v433 = vpack.c.b16 %v349, %v342
    %v434 = vpack.c.b16 %v350, %v343
    %v435 = vpack.c.b16 %v351, %v344
    %v436 = vpack.c.b16 %v352, %v345
    %v437 = vpack.c.b16 %v353, %v346
    %v438 = vpack.c.b16 %v361, %v354
    %v439 = vpack.c.b16 %v362, %v355
    %v440 = vpack.c.b16 %v363, %v356
    %v441 = vpack.c.b16 %v364, %v357
    %v442 = vpack.c.b16 %v365, %v358
    %v443 = vpack.c.b16 %v366, %v359
    %v444 = vpack.c.b16 %v367, %v360
    %v445 = vpack.c.b16 %v375, %v368
    %v446 = vpack.c.b16 %v376, %v369
    %v447 = vpack.c.b16 %v377, %v370
    %v448 = vpack.c.b16 %v378, %v371
    %v449 = vpack.c.b16 %v379, %v372
    %v450 = vpack.c.b16 %v380, %v373
    %v451 = vpack.c.b16 %v381, %v374
    %v452 = vpack.c.b16 %v389, %v382
    %v453 = vpack.c.b16 %v390, %v383
    %v454 = vpack.c.b16 %v391, %v384
    %v455 = vpack.c.b16 %v392, %v385
    %v456 = vpack.c.b16 %v393, %v386
    %v457 = vpack.c.b16 %v394, %v387
    %v458 = vpack.c.b16 %v395, %v388
    %v459 = vpack.c.b16 %v403, %v396
    %v460 = vpack.c.b16 %v404, %v397
    %v461 = vpack.c.b16 %v405, %v398
    %v462 = vpack.c.b16 %v406, %v399
    %v463 = vpack.c.b16 %v407, %v400
    %v464 = vpack.c.b16 %v408, %v401
    %v465 = vpack.c.b16 %v409, %v402
    %522 = vmatprep.subr.bf16.mxu0 %v411
    %523 = vmatpush1.bf16.msra.mxu0 %v410
    %524 = vmatprep.subr.bf16.mxu0 %v418
    %525 = vmatpush1.bf16.msra.mxu0 %v417
    %526 = vmatprep.subr.bf16.mxu0 %v425
    %527 = vmatpush1.bf16.msra.mxu0 %v424
    %528 = vmatprep.subr.bf16.mxu0 %v432
    %529 = vmatpush1.bf16.msra.mxu0 %v431
    %530 = vmatprep.subr.bf16.mxu0 %v439
    %531 = vmatpush1.bf16.msra.mxu0 %v438
    %532 = vmatprep.subr.bf16.mxu0 %v446
    %533 = vmatpush1.bf16.msra.mxu0 %v445
    %534 = vmatprep.subr.bf16.mxu0 %v453
    %535 = vmatpush1.bf16.msra.mxu0 %v452
    %536 = vmatprep.subr.bf16.mxu0 %v460
    %537 = vmatpush1.bf16.msra.mxu0 %v459
    %538 = vmatprep.subr.bf16.mxu0 0
    %539 = vmatpush1.bf16.msra.mxu0 0
    %540 = vmatprep.subr.bf16.mxu0 0
    %541 = vmatpush1.bf16.msra.mxu0 0
    %542 = vmatprep.subr.bf16.mxu0 0
    %543 = vmatpush1.bf16.msra.mxu0 0
    %544 = vmatprep.subr.bf16.mxu0 0
    %545 = vmatpush1.bf16.msra.mxu0 0
    %546 = vmatprep.subr.bf16.mxu0 0
    %547 = vmatpush1.bf16.msra.mxu0 0
    %548 = vmatprep.subr.bf16.mxu0 0
    %549 = vmatpush1.bf16.msra.mxu0 0
    %550 = vmatprep.subr.bf16.mxu0 0
    %551 = vmatpush1.bf16.msra.mxu0 0
    %552 = vmatprep.subr.bf16.mxu0 0
    %553 = vmatpush1.bf16.msra.mxu0 0
    %554 = vmatprep.mubr.bf16.mxu0 0
    %555 = vmatmul.mubr.bf16.gmra.mrb[0].mxu0 %v132
    %v556 = vpop.f32.mrb[0].mxu0
    %v557 = vadd.f32 %v202, %v556
    %v558 = vpop.f32.mrb[0].mxu0
    %v559 = vadd.f32 %v206, %v558
    %v560 = vpop.f32.mrb[0].mxu0
    %v561 = vpop.f32.mrb[0].mxu0
    %562 = vdwg.mxu0
    %563 = vmatprep.subr.bf16.mxu0 %v413
    %564 = vmatpush1.bf16.msra.mxu0 %v412
    %565 = vmatprep.subr.bf16.mxu0 %v420
    %566 = vmatpush1.bf16.msra.mxu0 %v419
    %567 = vmatprep.subr.bf16.mxu0 %v427
    %568 = vmatpush1.bf16.msra.mxu0 %v426
    %569 = vmatprep.subr.bf16.mxu0 %v434
    %570 = vmatpush1.bf16.msra.mxu0 %v433
    %571 = vmatprep.subr.bf16.mxu0 %v441
    %572 = vmatpush1.bf16.msra.mxu0 %v440
    %573 = vmatprep.subr.bf16.mxu0 %v448
    %574 = vmatpush1.bf16.msra.mxu0 %v447
    %575 = vmatprep.subr.bf16.mxu0 %v455
    %576 = vmatpush1.bf16.msra.mxu0 %v454
    %577 = vmatprep.subr.bf16.mxu0 %v462
    %578 = vmatpush1.bf16.msra.mxu0 %v461
    %579 = vmatprep.subr.bf16.mxu0 0
    %580 = vmatpush1.bf16.msra.mxu0 0
    %581 = vmatprep.subr.bf16.mxu0 0
    %582 = vmatpush1.bf16.msra.mxu0 0
    %583 = vmatprep.subr.bf16.mxu0 0
    %584 = vmatpush1.bf16.msra.mxu0 0
    %585 = vmatprep.subr.bf16.mxu0 0
    %586 = vmatpush1.bf16.msra.mxu0 0
    %587 = vmatprep.subr.bf16.mxu0 0
    %588 = vmatpush1.bf16.msra.mxu0 0
    %589 = vmatprep.subr.bf16.mxu0 0
    %590 = vmatpush1.bf16.msra.mxu0 0
    %591 = vmatprep.subr.bf16.mxu0 0
    %592 = vmatpush1.bf16.msra.mxu0 0
    %593 = vmatprep.subr.bf16.mxu0 0
    %594 = vmatpush1.bf16.msra.mxu0 0
    %595 = vmatprep.mubr.bf16.mxu0 0
    %596 = vmatmul.mubr.bf16.gmra.mrb[0].mxu0 %v132
    %v597 = vpop.f32.mrb[0].mxu0
    %v598 = vadd.f32 %v210, %v597
    %v599 = vpop.f32.mrb[0].mxu0
    %v600 = vadd.f32 %v214, %v599
    %v601 = vpop.f32.mrb[0].mxu0
    %v602 = vpop.f32.mrb[0].mxu0
    %603 = vdwg.mxu0
    %604 = vmatprep.subr.bf16.mxu0 %v415
    %605 = vmatpush1.bf16.msra.mxu0 %v414
    %606 = vmatprep.subr.bf16.mxu0 %v422
    %607 = vmatpush1.bf16.msra.mxu0 %v421
    %608 = vmatprep.subr.bf16.mxu0 %v429
    %609 = vmatpush1.bf16.msra.mxu0 %v428
    %610 = vmatprep.subr.bf16.mxu0 %v436
    %611 = vmatpush1.bf16.msra.mxu0 %v435
    %612 = vmatprep.subr.bf16.mxu0 %v443
    %613 = vmatpush1.bf16.msra.mxu0 %v442
    %614 = vmatprep.subr.bf16.mxu0 %v450
    %615 = vmatpush1.bf16.msra.mxu0 %v449
    %616 = vmatprep.subr.bf16.mxu0 %v457
    %617 = vmatpush1.bf16.msra.mxu0 %v456
    %618 = vmatprep.subr.bf16.mxu0 %v464
    %619 = vmatpush1.bf16.msra.mxu0 %v463
    %620 = vmatprep.subr.bf16.mxu0 0
    %621 = vmatpush1.bf16.msra.mxu0 0
    %622 = vmatprep.subr.bf16.mxu0 0
    %623 = vmatpush1.bf16.msra.mxu0 0
    %624 = vmatprep.subr.bf16.mxu0 0
    %625 = vmatpush1.bf16.msra.mxu0 0
    %626 = vmatprep.subr.bf16.mxu0 0
    %627 = vmatpush1.bf16.msra.mxu0 0
    %628 = vmatprep.subr.bf16.mxu0 0
    %629 = vmatpush1.bf16.msra.mxu0 0
    %630 = vmatprep.subr.bf16.mxu0 0
    %631 = vmatpush1.bf16.msra.mxu0 0
    %632 = vmatprep.subr.bf16.mxu0 0
    %633 = vmatpush1.bf16.msra.mxu0 0
    %634 = vmatprep.subr.bf16.mxu0 0
    %635 = vmatpush1.bf16.msra.mxu0 0
    %636 = vmatprep.mubr.bf16.mxu0 0
    %637 = vmatmul.mubr.bf16.gmra.mrb[0].mxu0 %v132
    %v638 = vpop.f32.mrb[0].mxu0
    %v639 = vadd.f32 %v218, %v638
    %v640 = vpop.f32.mrb[0].mxu0
    %v641 = vadd.f32 %v222, %v640
    %v642 = vpop.f32.mrb[0].mxu0
    %v643 = vpop.f32.mrb[0].mxu0
    %644 = vdwg.mxu0
    %645 = vmatprep.subr.bf16.mxu0 0
    %646 = vmatpush1.bf16.msra.mxu0 %v416
    %647 = vmatprep.subr.bf16.mxu0 0
    %648 = vmatpush1.bf16.msra.mxu0 %v423
    %649 = vmatprep.subr.bf16.mxu0 0
    %650 = vmatpush1.bf16.msra.mxu0 %v430
    %651 = vmatprep.subr.bf16.mxu0 0
    %652 = vmatpush1.bf16.msra.mxu0 %v437
    %653 = vmatprep.subr.bf16.mxu0 0
    %654 = vmatpush1.bf16.msra.mxu0 %v444
    %655 = vmatprep.subr.bf16.mxu0 0
    %656 = vmatpush1.bf16.msra.mxu0 %v451
    %657 = vmatprep.subr.bf16.mxu0 0
    %658 = vmatpush1.bf16.msra.mxu0 %v458
    %659 = vmatprep.subr.bf16.mxu0 0
    %660 = vmatpush1.bf16.msra.mxu0 %v465
    %661 = vmatprep.subr.bf16.mxu0 0
    %662 = vmatpush1.bf16.msra.mxu0 0
    %663 = vmatprep.subr.bf16.mxu0 0
    %664 = vmatpush1.bf16.msra.mxu0 0
    %665 = vmatprep.subr.bf16.mxu0 0
    %666 = vmatpush1.bf16.msra.mxu0 0
    %667 = vmatprep.subr.bf16.mxu0 0
    %668 = vmatpush1.bf16.msra.mxu0 0
    %669 = vmatprep.subr.bf16.mxu0 0
    %670 = vmatpush1.bf16.msra.mxu0 0
    %671 = vmatprep.subr.bf16.mxu0 0
    %672 = vmatpush1.bf16.msra.mxu0 0
    %673 = vmatprep.subr.bf16.mxu0 0
    %674 = vmatpush1.bf16.msra.mxu0 0
    %675 = vmatprep.subr.bf16.mxu0 0
    %676 = vmatpush1.bf16.msra.mxu0 0
    %677 = vmatprep.mubr.bf16.mxu0 0
    %678 = vmatmul.mubr.bf16.gmra.mrb[0].mxu0 %v132
    %v679 = vpop.f32.mrb[0].mxu0
    %v680 = vadd.f32 %v226, %v679
    %v681 = vpop.f32.mrb[0].mxu0
    %v682 = vpop.f32.mrb[0].mxu0
    %v683 = vpop.f32.mrb[0].mxu0
    %684 = vdwg.mxu0
    %v685 = vtanh.pop %v557
    %v686 = vtanh.pop %v559
    %v687 = vtanh.pop %v598
    %v688 = vtanh.pop %v600
    %v689 = vtanh.pop %v639
    %v690 = vtanh.pop %v641
    %v691 = vtanh.pop %v680
    %v692 = vpack.c.bf16 %v685, %v685
    %v693 = vpack.c.bf16 %v686, %v686
    %v694 = vpack.c.bf16 %v687, %v687
    %v695 = vpack.c.bf16 %v688, %v688
    %v696 = vpack.c.bf16 %v689, %v689
    %v697 = vpack.c.bf16 %v690, %v690
    %v698 = vpack.c.bf16 %v691, %v691
    %v706 = vunpack.c.l.b16 %v692
    %v707 = vunpack.c.l.b16 %v693
    %v708 = vunpack.c.l.b16 %v694
    %v709 = vunpack.c.l.b16 %v695
    %v710 = vunpack.c.l.b16 %v696
    %v711 = vunpack.c.l.b16 %v697
    %v712 = vunpack.c.l.b16 %v698
    %v713 = vpack.c.b16 %v707, %v706
    %v714 = vpack.c.b16 %v709, %v708
    %v715 = vpack.c.b16 %v711, %v710
    %v716 = vpack.c.b16 %v712, %v712
    %721 = vst [vmem:[#allocation2] sm:$0xff] %v713
    %722 = vst [vmem:[#allocation2 + $0x8] sm:$0xff] %v714
    %723 = vst [vmem:[#allocation2 + $0x10] sm:$0xff] %v715
    %vm724 = vcmask 125952
    %725 = vst.msk [vmem:[#allocation2 + $0x18] sm:$0xf] %vm724, %v716
    // Predicated region
    $region22: #{generator_forward.1} parent=1 // pred_check
      _
    $region23: #{generator_forward.1} parent=1 // pred_check_branch
      %727 = sbr.rel (0) target = $region25
    $region24: #{generator_forward.1} parent=1 // pred_region
      %s729 = ssub.s32 448, 448
      %730 = vsyncadd [#allocation3], %s729
      %s732 = sshll.u32 [#allocation2], 4
      %s733 = int_to_ptr.vmem [resolvable:$true] %s732
      %735 = dma.vmem_to_hbm [thread:$0]  %s733, 448, %s5, [#allocation3]
    $region25: #{generator_forward.1} parent=1 // pred_fallthru
      _
    // Predicated region
    $region26: #{generator_forward.1} parent=1 // pred_check
      _
    $region27: #{generator_forward.1} parent=1 // pred_check_branch
      %737 = sbr.rel (0) target = $region29
    $region28: #{generator_forward.1} parent=1 // pred_region
      %738 = dma.done [#allocation3], 448
    $region29: #{generator_forward.1} parent=1 // pred_fallthru
      _
    %739 = vsyncpa [#allocation3], 1

</llo_original>
